<compile_context>
chip_gen: v5e
topology: v5e:2x2
jax: 0.10.0
libtpu: 0.0.40
codegen_flags: <defaults>
</compile_context>

<pallas_src>
import functools

import jax
import jax.numpy as jnp
from jax.experimental import pallas as pl
from jax.experimental.pallas import tpu as pltpu


def _round_up(n, m):
    return ((n + m - 1) // m) * m


def bike_volume_kernel(x_ref, w1_ref, b1_ref, w2_ref, b2_ref, w3t_ref, b3_ref, o_ref):
    # BatchNorm + bias already folded into w/b; Dropout is identity in eval mode.
    x = x_ref[...]                                   # (tile, input_dim)

    # Layer 1 (feature-major): contract input_dim of w1' (D,32) with dim 1 of x
    # (tile,D) -> (32, tile); batch stays on the 128-lane axis.
    h = jax.lax.dot_general(
        w1_ref[...], x,
        dimension_numbers=(((0,), (1,)), ((), ())),
        preferred_element_type=jnp.float32,
    )
    h = jnp.maximum(h + b1_ref[...], 0.0)            # b1' is (32,1) column bias

    # Layer 2: contract dim 0 of w2' (32,16) with dim 0 of h (32,tile) -> (16, tile).
    h = jax.lax.dot_general(
        w2_ref[...], h,
        dimension_numbers=(((0,), (0,)), ((), ())),
        preferred_element_type=jnp.float32,
    )
    h = jnp.maximum(h + b2_ref[...], 0.0)            # b2' is (16,1) column bias

    # Output layer: (1,16) @ (16,tile) -> (1, tile); lane-dense full-width store.
    o = jnp.dot(w3t_ref[...], h, preferred_element_type=jnp.float32)
    o_ref[...] = o + b3_ref[0]                       # b3 scalar from SMEM


@functools.partial(jax.jit, static_argnames=("b_tile",))
def bike_volume_nn(x, params, *, b_tile=8192):
    """x: (B, input_dim) float32. params: raw PyTorch-style weights/BN stats.

    Returns (B, 1) float32, identical (up to rounding) to the eval-mode forward.
    """
    eps = 1e-5
    B, input_dim = x.shape

    # ---- Fold BatchNorm (eval) + bias into the preceding Linear (wrapper-side) ----
    s1 = params["g1"] * jax.lax.rsqrt(params["v1"] + eps)                   # (1, 32)
    w1f = params["w1"] * s1                                                 # (D, 32)
    b1f = ((params["b1"] - params["m1"]) * s1 + params["be1"]).reshape(32, 1)

    s2 = params["g2"] * jax.lax.rsqrt(params["v2"] + eps)                   # (1, 16)
    w2f = params["w2"] * s2                                                 # (32, 16)
    b2f = ((params["b2"] - params["m2"]) * s2 + params["be2"]).reshape(16, 1)

    w3t = params["w3"].T                                                    # (1, 16)
    b3 = params["b3"].reshape(1)                                            # (1,) SMEM scalar

    # ---- Batch tile selection (lane-dense multiples of 128) ----
    tile_cap = _round_up(b_tile, 128)
    if B <= 128:
        tile = 128
    else:
        # Ensure at least two grid steps so ("parallel",) can use both TensorCores
        # on v7x while still allowing big tiles for HBM-roofline amortization.
        tile = min(tile_cap, _round_up((B + 1) // 2, 128))
    b_pad = _round_up(B, tile)
    if b_pad != B:
        x = jnp.pad(x, ((0, b_pad - B), (0, 0)))
    num_tiles = b_pad // tile

    # ---- VMEM budget: x blocks are lane-padded input_dim -> 128, double-buffered ----
    lane_pad = _round_up(input_dim, 128)
    vmem_est = (
        2 * tile * lane_pad * 4        # double-buffered x blocks (lane-padded)
        + 2 * 8 * tile * 4             # double-buffered (1, tile) output blocks (sublane-padded)
        + tile * (32 + 16) * 4         # feature-major intermediates
        + (2 << 20)                    # params, biases, slack
    )
    vmem_limit = int(min(max(vmem_est, 32 << 20), 100 << 20))

    grid_spec = pltpu.PrefetchScalarGridSpec(
        num_scalar_prefetch=0,
        grid=(num_tiles,),
        in_specs=[
            pl.BlockSpec((tile, input_dim), lambda i: (i, 0)),    # x: tiled over batch
            pl.BlockSpec((input_dim, 32), lambda i: (0, 0)),      # w1' (resident)
            pl.BlockSpec((32, 1), lambda i: (0, 0)),              # b1' column
            pl.BlockSpec((32, 16), lambda i: (0, 0)),             # w2'
            pl.BlockSpec((16, 1), lambda i: (0, 0)),              # b2' column
            pl.BlockSpec((1, 16), lambda i: (0, 0)),              # w3^T
            pl.BlockSpec(memory_space=pltpu.MemorySpace.SMEM),    # b3 scalar in SMEM
        ],
        out_specs=pl.BlockSpec((1, tile), lambda i: (0, i)),      # lane-dense output row
    )

    out = pl.pallas_call(
        bike_volume_kernel,
        out_shape=jax.ShapeDtypeStruct((1, b_pad), jnp.float32),
        grid_spec=grid_spec,
        compiler_params=pltpu.CompilerParams(
            dimension_semantics=("parallel",),
            vmem_limit_bytes=vmem_limit,
        ),
    )(x, w1f, b1f, w2f, b2f, w3t, b3)

    return out.reshape(b_pad, 1)[:B]


def make_params(key, input_dim):
    """Deterministic synthetic parameters matching BikeVolumeNN(num_layers=2)."""
    ks = jax.random.split(key, 12)
    f32 = jnp.float32

    def lin(kw, kb, fan_in, fan_out):
        bound = 1.0 / jnp.sqrt(f32(fan_in))
        w = jax.random.uniform(kw, (fan_in, fan_out), f32, -bound, bound)
        b = jax.random.uniform(kb, (1, fan_out), f32, -bound, bound)
        return w, b

    w1, b1 = lin(ks[0], ks[1], input_dim, 32)
    w2, b2 = lin(ks[2], ks[3], 32, 16)
    w3, b3 = lin(ks[4], ks[5], 16, 1)

    # BatchNorm params / running stats (eval mode), non-trivial but deterministic.
    g1 = 1.0 + 0.1 * jax.random.normal(ks[6], (1, 32), f32)
    be1 = 0.1 * jax.random.normal(ks[7], (1, 32), f32)
    m1 = 0.1 * jax.random.normal(ks[8], (1, 32), f32)
    v1 = 1.0 + 0.1 * jax.random.uniform(ks[9], (1, 32), f32)

    g2 = 1.0 + 0.1 * jax.random.normal(ks[10], (1, 16), f32)
    be2 = 0.1 * jax.random.normal(ks[11], (1, 16), f32)
    m2 = jnp.zeros((1, 16), f32)
    v2 = jnp.ones((1, 16), f32)

    return dict(
        w1=w1, b1=b1, g1=g1, be1=be1, m1=m1, v1=v1,
        w2=w2, b2=b2, g2=g2, be2=be2, m2=m2, v2=v2,
        w3=w3, b3=b3,
    )


def reference(x, p, eps=1e-5):
    h = x @ p["w1"] + p["b1"]
    h = (h - p["m1"]) / jnp.sqrt(p["v1"] + eps) * p["g1"] + p["be1"]
    h = jnp.maximum(h, 0.0)
    h = h @ p["w2"] + p["b2"]
    h = (h - p["m2"]) / jnp.sqrt(p["v2"] + eps) * p["g2"] + p["be2"]
    h = jnp.maximum(h, 0.0)
    return h @ p["w3"] + p["b3"]


if __name__ == "__main__":
    key = jax.random.PRNGKey(0)
    k_x, k_p, k_x2 = jax.random.split(key, 3)

    B, input_dim = 8, 16
    x = jax.random.normal(k_x, (B, input_dim), jnp.float32)
    params = make_params(k_p, input_dim)

    out = bike_volume_nn(x, params)
    out = jax.block_until_ready(out)
    ref = reference(x, params)
    assert out.shape == (B, 1)
    assert jnp.allclose(out, ref, atol=1e-4, rtol=1e-4), (out, ref)

    # Also exercise the multi-tile / padded path (B not a multiple of the tile,
    # >= 2 grid steps so the parallel axis is actually split).
    B2 = 300
    x2 = jax.random.normal(k_x2, (B2, input_dim), jnp.float32)
    out2 = jax.block_until_ready(bike_volume_nn(x2, params, b_tile=128))
    ref2 = reference(x2, params)
    assert out2.shape == (B2, 1)
    assert jnp.allclose(out2, ref2, atol=1e-4, rtol=1e-4)

    print("KERNEL_OK")
</pallas_src>

<mosaic_0001>
module attributes {stable_mosaic.version = 11 : i64} {
  func.func @bike_volume_kernel(%arg0: i32, %arg1: memref<128x16xf32, #tpu.memory_space<vmem>>, %arg2: memref<16x32xf32, #tpu.memory_space<vmem>>, %arg3: memref<32x1xf32, #tpu.memory_space<vmem>>, %arg4: memref<32x16xf32, #tpu.memory_space<vmem>>, %arg5: memref<16x1xf32, #tpu.memory_space<vmem>>, %arg6: memref<1x16xf32, #tpu.memory_space<vmem>>, %arg7: memref<1xf32, #tpu.memory_space<smem>>, %arg8: memref<1x128xf32, #tpu.memory_space<vmem>>) attributes {dimension_semantics = [#tpu.dimension_semantics<parallel>], iteration_bounds = array<i64: 1>, scalar_prefetch = 0 : i64, scratch_operands = 0 : i64, tpu.core_type = #tpu.core_type<tc>, window_params = [{transform_indices = @transform_0, window_bounds = array<i64: 128, 16>}, {pipeline_mode = #tpu.pipeline_mode<synchronous>, transform_indices = @transform_1, window_bounds = array<i64: 16, 32>}, {pipeline_mode = #tpu.pipeline_mode<synchronous>, transform_indices = @transform_2, window_bounds = array<i64: 32, 1>}, {pipeline_mode = #tpu.pipeline_mode<synchronous>, transform_indices = @transform_3, window_bounds = array<i64: 32, 16>}, {pipeline_mode = #tpu.pipeline_mode<synchronous>, transform_indices = @transform_4, window_bounds = array<i64: 16, 1>}, {pipeline_mode = #tpu.pipeline_mode<synchronous>, transform_indices = @transform_5, window_bounds = array<i64: 1, 16>}, {transform_indices = @transform_6, window_bounds = array<i64: 1>}, {transform_indices = @transform_7, window_bounds = array<i64: 1, 128>}]} {
    %c0 = arith.constant 0 : index
    %c0_0 = arith.constant 0 : index
    %0 = vector.load %arg1[%c0, %c0_0] : memref<128x16xf32, #tpu.memory_space<vmem>>, vector<128x16xf32>
    %c0_1 = arith.constant 0 : index
    %c0_2 = arith.constant 0 : index
    %1 = vector.load %arg2[%c0_1, %c0_2] : memref<16x32xf32, #tpu.memory_space<vmem>>, vector<16x32xf32>
    %cst = arith.constant dense<0.000000e+00> : vector<32x128xf32>
    %2 = tpu.matmul %1, %0, %cst {dimension_numbers = #tpu.dot_dimension_numbers<[0], [1], [1], [0], [0, 1, 1, 0], [], []>} : vector<16x32xf32>, vector<128x16xf32>, vector<32x128xf32> -> vector<32x128xf32>
    %c0_3 = arith.constant 0 : index
    %c0_4 = arith.constant 0 : index
    %3 = vector.load %arg3[%c0_3, %c0_4] : memref<32x1xf32, #tpu.memory_space<vmem>>, vector<32x1xf32>
    %4 = vector.broadcast %3 : vector<32x1xf32> to vector<32x128xf32>
    %5 = arith.addf %2, %4 : vector<32x128xf32>
    %cst_5 = arith.constant 0.000000e+00 : f32
    %6 = vector.broadcast %cst_5 : f32 to vector<32x128xf32>
    %7 = arith.maximumf %5, %6 : vector<32x128xf32>
    %c0_6 = arith.constant 0 : index
    %c0_7 = arith.constant 0 : index
    %8 = vector.load %arg4[%c0_6, %c0_7] : memref<32x16xf32, #tpu.memory_space<vmem>>, vector<32x16xf32>
    %cst_8 = arith.constant dense<0.000000e+00> : vector<16x128xf32>
    %9 = tpu.matmul %8, %7, %cst_8 {dimension_numbers = #tpu.dot_dimension_numbers<[0], [0], [1], [1], [0, 1, 1, 1], [], []>} : vector<32x16xf32>, vector<32x128xf32>, vector<16x128xf32> -> vector<16x128xf32>
    %c0_9 = arith.constant 0 : index
    %c0_10 = arith.constant 0 : index
    %10 = vector.load %arg5[%c0_9, %c0_10] : memref<16x1xf32, #tpu.memory_space<vmem>>, vector<16x1xf32>
    %11 = vector.broadcast %10 : vector<16x1xf32> to vector<16x128xf32>
    %12 = arith.addf %9, %11 : vector<16x128xf32>
    %cst_11 = arith.constant 0.000000e+00 : f32
    %13 = vector.broadcast %cst_11 : f32 to vector<16x128xf32>
    %14 = arith.maximumf %12, %13 : vector<16x128xf32>
    %c0_12 = arith.constant 0 : index
    %c0_13 = arith.constant 0 : index
    %15 = vector.load %arg6[%c0_12, %c0_13] : memref<1x16xf32, #tpu.memory_space<vmem>>, vector<1x16xf32>
    %cst_14 = arith.constant dense<0.000000e+00> : vector<1x128xf32>
    %16 = tpu.matmul %15, %14, %cst_14 {dimension_numbers = #tpu.dot_dimension_numbers<[1], [0], [0], [1], [0, 0, 1, 1], [], []>} : vector<1x16xf32>, vector<16x128xf32>, vector<1x128xf32> -> vector<1x128xf32>
    %c0_15 = arith.constant 0 : index
    %17 = memref.load %arg7[%c0_15] : memref<1xf32, #tpu.memory_space<smem>>
    %18 = vector.broadcast %17 : f32 to vector<1x128xf32>
    %19 = arith.addf %16, %18 : vector<1x128xf32>
    %c0_16 = arith.constant 0 : index
    %c0_17 = arith.constant 0 : index
    %20 = vector.load %arg8[%c0_16, %c0_17] : memref<1x128xf32, #tpu.memory_space<vmem>>, vector<1x128xf32>
    tpu.vector_store %arg8[%c0_16, %c0_17], %19 {strides = array<i32>} : memref<1x128xf32, #tpu.memory_space<vmem>>, vector<1x128xf32>,
    return
  }
  func.func @transform_0(%arg0: i32) -> (i32, i32) {
    %c0_i32 = arith.constant 0 : i32
    %c0_i32_0 = arith.constant 0 : i32
    return %arg0, %c0_i32 : i32, i32
  }
  func.func @transform_1(%arg0: i32) -> (i32, i32) {
    %c0_i32 = arith.constant 0 : i32
    %c0_i32_0 = arith.constant 0 : i32
    %c0_i32_1 = arith.constant 0 : i32
    return %c0_i32, %c0_i32_0 : i32, i32
  }
  func.func @transform_2(%arg0: i32) -> (i32, i32) {
    %c0_i32 = arith.constant 0 : i32
    %c0_i32_0 = arith.constant 0 : i32
    %c0_i32_1 = arith.constant 0 : i32
    return %c0_i32, %c0_i32_0 : i32, i32
  }
  func.func @transform_3(%arg0: i32) -> (i32, i32) {
    %c0_i32 = arith.constant 0 : i32
    %c0_i32_0 = arith.constant 0 : i32
    %c0_i32_1 = arith.constant 0 : i32
    return %c0_i32, %c0_i32_0 : i32, i32
  }
  func.func @transform_4(%arg0: i32) -> (i32, i32) {
    %c0_i32 = arith.constant 0 : i32
    %c0_i32_0 = arith.constant 0 : i32
    %c0_i32_1 = arith.constant 0 : i32
    return %c0_i32, %c0_i32_0 : i32, i32
  }
  func.func @transform_5(%arg0: i32) -> (i32, i32) {
    %c0_i32 = arith.constant 0 : i32
    %c0_i32_0 = arith.constant 0 : i32
    %c0_i32_1 = arith.constant 0 : i32
    return %c0_i32, %c0_i32_0 : i32, i32
  }
  func.func @transform_6(%arg0: i32) -> i32 {
    %c0_i32 = arith.constant 0 : i32
    %c0_i32_0 = arith.constant 0 : i32
    return %c0_i32 : i32
  }
  func.func @transform_7(%arg0: i32) -> (i32, i32) {
    %c0_i32 = arith.constant 0 : i32
    %c0_i32_0 = arith.constant 0 : i32
    return %c0_i32, %arg0 : i32, i32
  }
}

</mosaic_0001>

<llo_original>
// kernel: bike_volume_nn.1
$region0: #{bike_volume_nn.1}
  #allocation0 [shape = 'u32[]', space=smem, size = 0x4, offset = 0x4, fixed_abs, tag = 'smem constant byte address 0x4 - core index']
  #allocation1 [shape = 'u32[72,128]{1,0:T(1,128)}', space=vmem, size = 0x9000, scoped, tag = 'internal scratch']
  #allocation2 [shape = 'f32[1]{0:T(128)S(6)}', space=smem, size = 0x200, scoped, tag = 'scoped memory for bike_volume_nn.1']
  %s0 = inlined_call_operand.vmem [shape: f32[128,16], index: 0, kind: input, shape index: {}]
  %s1 = inlined_call_operand.vmem [shape: f32[16,32], index: 1, kind: input, shape index: {}]
  %s2 = inlined_call_operand.vmem [shape: f32[32,1], index: 2, kind: input, shape index: {}]
  %s3 = inlined_call_operand.vmem [shape: f32[32,16], index: 3, kind: input, shape index: {}]
  %s4 = inlined_call_operand.vmem [shape: f32[16,1], index: 4, kind: input, shape index: {}]
  %s5 = inlined_call_operand.vmem [shape: f32[1,16], index: 5, kind: input, shape index: {}]
  %s6 = inlined_call_operand.<no memory space> [shape: f32[1], index: 6, kind: input, shape index: {}]
  %s7 = inlined_call_operand.vmem [shape: f32[1,128], index: 7, kind: output, shape index: {}]
  %s8 = sld [smem:[#allocation0]]
  $region38: #{bike_volume_nn.1} parent=0
    _
  %s10 = ssub.s32 1, %s8
  %s11 = scalar_select 0, %s10, %s8
  %12 = sst [smem:[#allocation2]] %s6
  // Predicated region
  $region2: #{bike_volume_nn.1} parent=0 // pred_check
    _
  $region3: #{bike_volume_nn.1} parent=0 // pred_check_branch
    %14 = sbr.rel (0) target = $region5
  $region4: #{bike_volume_nn.1} parent=0 // pred_region
    _
  $region5: #{bike_volume_nn.1} parent=0 // pred_fallthru
    _
  // Predicated region
  $region6: #{bike_volume_nn.1} parent=0 // pred_check
    _
  $region7: #{bike_volume_nn.1} parent=0 // pred_check_branch
    %16 = sbr.rel (0) target = $region9
  $region8: #{bike_volume_nn.1} parent=0 // pred_region
    _
  $region9: #{bike_volume_nn.1} parent=0 // pred_fallthru
    _
  // Predicated region
  $region10: #{bike_volume_nn.1} parent=0 // pred_check
    _
  $region11: #{bike_volume_nn.1} parent=0 // pred_check_branch
    %18 = sbr.rel (0) target = $region13
  $region12: #{bike_volume_nn.1} parent=0 // pred_region
    _
  $region13: #{bike_volume_nn.1} parent=0 // pred_fallthru
    _
  // Predicated region
  $region14: #{bike_volume_nn.1} parent=0 // pred_check
    _
  $region15: #{bike_volume_nn.1} parent=0 // pred_check_branch
    %20 = sbr.rel (0) target = $region17
  $region16: #{bike_volume_nn.1} parent=0 // pred_region
    _
  $region17: #{bike_volume_nn.1} parent=0 // pred_fallthru
    _
  // Predicated region
  $region18: #{bike_volume_nn.1} parent=0 // pred_check
    _
  $region19: #{bike_volume_nn.1} parent=0 // pred_check_branch
    %22 = sbr.rel (0) target = $region21
  $region20: #{bike_volume_nn.1} parent=0 // pred_region
    _
  $region21: #{bike_volume_nn.1} parent=0 // pred_fallthru
    _
  // Predicated region
  $region22: #{bike_volume_nn.1} parent=0 // pred_check
    _
  $region23: #{bike_volume_nn.1} parent=0 // pred_check_branch
    %24 = sbr.rel (0) target = $region25
  $region24: #{bike_volume_nn.1} parent=0 // pred_region
    _
  $region25: #{bike_volume_nn.1} parent=0 // pred_fallthru
    _
  // Predicated region
  $region26: #{bike_volume_nn.1} parent=0 // pred_check
    _
  $region27: #{bike_volume_nn.1} parent=0 // pred_check_branch
    %26 = sbr.rel (0) target = $region29
  $region28: #{bike_volume_nn.1} parent=0 // pred_region
    _
  $region29: #{bike_volume_nn.1} parent=0 // pred_fallthru
    _
  %v27 = vld [vmem:[%s0] sm:$0xff]
  %v28 = vld [vmem:[%s0 + $0x8] sm:$0xff]
  %v29 = vld [vmem:[%s0 + $0x10] sm:$0xff]
  %v30 = vld [vmem:[%s0 + $0x18] sm:$0xff]
  %v31 = vld [vmem:[%s0 + $0x20] sm:$0xff]
  %v32 = vld [vmem:[%s0 + $0x28] sm:$0xff]
  %v33 = vld [vmem:[%s0 + $0x30] sm:$0xff]
  %v34 = vld [vmem:[%s0 + $0x38] sm:$0xff]
  %v35 = vld [vmem:[%s0 + $0x40] sm:$0xff]
  %v36 = vld [vmem:[%s0 + $0x48] sm:$0xff]
  %v37 = vld [vmem:[%s0 + $0x50] sm:$0xff]
  %v38 = vld [vmem:[%s0 + $0x58] sm:$0xff]
  %v39 = vld [vmem:[%s0 + $0x60] sm:$0xff]
  %v40 = vld [vmem:[%s0 + $0x68] sm:$0xff]
  %v41 = vld [vmem:[%s0 + $0x70] sm:$0xff]
  %v42 = vld [vmem:[%s0 + $0x78] sm:$0xff]
  %v43 = vld [vmem:[%s1] sm:$0xff]
  %v44 = vld [vmem:[%s1 + $0x8] sm:$0xff]
  %v45 = vld [vmem:[%s2] sm:$0xff]
  %v46 = vld [vmem:[%s2 + $0x8] sm:$0xff]
  %v47 = vld [vmem:[%s2 + $0x10] sm:$0xff]
  %v48 = vld [vmem:[%s2 + $0x18] sm:$0xff]
  %50 = vset.pattern.permute.xlu0 0
  %51 = vperm.xlu0 %50, %v45
  %v52 = vpop.permute.xlu0 %51
  %55 = vset.pattern.permute.xlu0 0
  %56 = vperm.xlu0 %55, %v46
  %v57 = vpop.permute.xlu0 %56
  %60 = vset.pattern.permute.xlu0 0
  %61 = vperm.xlu0 %60, %v47
  %v62 = vpop.permute.xlu0 %61
  %65 = vset.pattern.permute.xlu0 0
  %66 = vperm.xlu0 %65, %v48
  %v67 = vpop.permute.xlu0 %66
  %69 = vxpose.xlu0.b32.start [1/16] %v43, 128
  %70 = vxpose.xlu0.b32.cont [2/16] %v44, 128
  %71 = vxpose.xlu0.b32.cont [3/16] 0.0, 128
  %72 = vxpose.xlu0.b32.cont [4/16] 0.0, 128
  %73 = vxpose.xlu0.b32.cont [5/16] 0.0, 128
  %74 = vxpose.xlu0.b32.cont [6/16] 0.0, 128
  %75 = vxpose.xlu0.b32.cont [7/16] 0.0, 128
  %76 = vxpose.xlu0.b32.cont [8/16] 0.0, 128
  %77 = vxpose.xlu0.b32.cont [9/16] 0.0, 128
  %78 = vxpose.xlu0.b32.cont [10/16] 0.0, 128
  %79 = vxpose.xlu0.b32.cont [11/16] 0.0, 128
  %80 = vxpose.xlu0.b32.cont [12/16] 0.0, 128
  %81 = vxpose.xlu0.b32.cont [13/16] 0.0, 128
  %82 = vxpose.xlu0.b32.cont [14/16] 0.0, 128
  %83 = vxpose.xlu0.b32.cont [15/16] 0.0, 128
  %84 = vxpose.xlu0.b32.end [16/16] 0.0, 128
  %v85 = vpop.trf.xlu0
  %v86 = vpop.trf.xlu0
  %v87 = vpop.trf.xlu0
  %v88 = vpop.trf.xlu0
  %v89 = vpop.trf.xlu0
  %v90 = vpop.trf.xlu0
  %v91 = vpop.trf.xlu0
  %v92 = vpop.trf.xlu0
  %v93 = vpop.trf.xlu0
  %v94 = vpop.trf.xlu0
  %v95 = vpop.trf.xlu0
  %v96 = vpop.trf.xlu0
  %v97 = vpop.trf.xlu0
  %v98 = vpop.trf.xlu0
  %v99 = vpop.trf.xlu0
  %v100 = vpop.trf.xlu0
  %vm101 = vcmask 130048
  %v103 = vsel %vm101, %v85, 0
  %v106 = vsel %vm101, %v86, 0
  %v109 = vsel %vm101, %v87, 0
  %v112 = vsel %vm101, %v88, 0
  %v115 = vsel %vm101, %v27, 0
  %v118 = vsel %vm101, %v28, 0
  %v121 = vsel %vm101, %v29, 0
  %v124 = vsel %vm101, %v30, 0
  %v127 = vsel %vm101, %v31, 0
  %v130 = vsel %vm101, %v32, 0
  %v133 = vsel %vm101, %v33, 0
  %v136 = vsel %vm101, %v34, 0
  %v139 = vsel %vm101, %v35, 0
  %v142 = vsel %vm101, %v36, 0
  %v145 = vsel %vm101, %v37, 0
  %v148 = vsel %vm101, %v38, 0
  %v151 = vsel %vm101, %v39, 0
  %v154 = vsel %vm101, %v40, 0
  %v157 = vsel %vm101, %v41, 0
  %v160 = vsel %vm101, %v42, 0
  %162 = vmatpush.xpose.msra.mxu0 %v160
  %163 = vmatpush.xpose.msra.mxu0 %v157
  %164 = vmatpush.xpose.msra.mxu0 %v154
  %165 = vmatpush.xpose.msra.mxu0 %v151
  %166 = vmatpush.xpose.msra.mxu0 %v148
  %167 = vmatpush.xpose.msra.mxu0 %v145
  %168 = vmatpush.xpose.msra.mxu0 %v142
  %169 = vmatpush.xpose.msra.mxu0 %v139
  %170 = vmatpush.xpose.msra.mxu0 %v136
  %171 = vmatpush.xpose.msra.mxu0 %v133
  %172 = vmatpush.xpose.msra.mxu0 %v130
  %173 = vmatpush.xpose.msra.mxu0 %v127
  %174 = vmatpush.xpose.msra.mxu0 %v124
  %175 = vmatpush.xpose.msra.mxu0 %v121
  %176 = vmatpush.xpose.msra.mxu0 %v118
  %177 = vmatpush.xpose.msra.mxu0 %v115
  %178 = vmatmul.f32.gmra.mxu0 %v103
  %v179 = vpop.f32.mrf.mxu0
  %v180 = vadd.f32 %v52, %v179
  %181 = vmatmul.f32.gmra.mxu0 %v106
  %v182 = vpop.f32.mrf.mxu0
  %v183 = vadd.f32 %v57, %v182
  %184 = vmatmul.f32.gmra.mxu0 %v109
  %v185 = vpop.f32.mrf.mxu0
  %v186 = vadd.f32 %v62, %v185
  %187 = vmatmul.f32.gmra.mxu0 %v112
  %v188 = vpop.f32.mrf.mxu0
  %v189 = vadd.f32 %v67, %v188
  %190 = vdwg.mxu0
  %v191 = vmax.f32 %v180, 0.0
  %v192 = vmax.f32 %v183, 0.0
  %v193 = vmax.f32 %v186, 0.0
  %v194 = vmax.f32 %v189, 0.0
  %v195 = vld [vmem:[%s3] sm:$0xff]
  %v196 = vld [vmem:[%s3 + $0x8] sm:$0xff]
  %v197 = vld [vmem:[%s3 + $0x10] sm:$0xff]
  %v198 = vld [vmem:[%s3 + $0x18] sm:$0xff]
  %v199 = vld [vmem:[%s4] sm:$0xff]
  %v200 = vld [vmem:[%s4 + $0x8] sm:$0xff]
  %202 = vset.pattern.permute.xlu0 0
  %203 = vperm.xlu0 %202, %v199
  %v204 = vpop.permute.xlu0 %203
  %207 = vset.pattern.permute.xlu0 0
  %208 = vperm.xlu0 %207, %v200
  %v209 = vpop.permute.xlu0 %208
  %211 = vxpose.xlu0.b32.start [1/16] %v195, 128
  %212 = vxpose.xlu0.b32.cont [2/16] %v196, 128
  %213 = vxpose.xlu0.b32.cont [3/16] %v197, 128
  %214 = vxpose.xlu0.b32.cont [4/16] %v198, 128
  %215 = vxpose.xlu0.b32.cont [5/16] 0.0, 128
  %216 = vxpose.xlu0.b32.cont [6/16] 0.0, 128
  %217 = vxpose.xlu0.b32.cont [7/16] 0.0, 128
  %218 = vxpose.xlu0.b32.cont [8/16] 0.0, 128
  %219 = vxpose.xlu0.b32.cont [9/16] 0.0, 128
  %220 = vxpose.xlu0.b32.cont [10/16] 0.0, 128
  %221 = vxpose.xlu0.b32.cont [11/16] 0.0, 128
  %222 = vxpose.xlu0.b32.cont [12/16] 0.0, 128
  %223 = vxpose.xlu0.b32.cont [13/16] 0.0, 128
  %224 = vxpose.xlu0.b32.cont [14/16] 0.0, 128
  %225 = vxpose.xlu0.b32.cont [15/16] 0.0, 128
  %226 = vxpose.xlu0.b32.end [16/16] 0.0, 128
  %v227 = vpop.trf.xlu0
  %v228 = vpop.trf.xlu0
  %v229 = vpop.trf.xlu0
  %v230 = vpop.trf.xlu0
  %v231 = vpop.trf.xlu0
  %v232 = vpop.trf.xlu0
  %v233 = vpop.trf.xlu0
  %v234 = vpop.trf.xlu0
  %v235 = vpop.trf.xlu0
  %v236 = vpop.trf.xlu0
  %v237 = vpop.trf.xlu0
  %v238 = vpop.trf.xlu0
  %v239 = vpop.trf.xlu0
  %v240 = vpop.trf.xlu0
  %v241 = vpop.trf.xlu0
  %v242 = vpop.trf.xlu0
  %vm243 = vcmask 261120
  %v245 = vsel %vm243, %v227, 0
  %v248 = vsel %vm243, %v228, 0
  %250 = vmatpush.msra.mxu0 0.0
  %251 = vmatpush.msra.mxu0 0.0
  %252 = vmatpush.msra.mxu0 0.0
  %253 = vmatpush.msra.mxu0 0.0
  %254 = vmatpush.msra.mxu0 0.0
  %255 = vmatpush.msra.mxu0 0.0
  %256 = vmatpush.msra.mxu0 0.0
  %257 = vmatpush.msra.mxu0 0.0
  %258 = vmatpush.msra.mxu0 0.0
  %259 = vmatpush.msra.mxu0 0.0
  %260 = vmatpush.msra.mxu0 0.0
  %261 = vmatpush.msra.mxu0 0.0
  %262 = vmatpush.msra.mxu0 %v194
  %263 = vmatpush.msra.mxu0 %v193
  %264 = vmatpush.msra.mxu0 %v192
  %265 = vmatpush.msra.mxu0 %v191
  %266 = vmatmul.f32.gmra.mxu0 %v245
  %v267 = vpop.f32.mrf.mxu0
  %v268 = vadd.f32 %v204, %v267
  %269 = vmatmul.f32.gmra.mxu0 %v248
  %v270 = vpop.f32.mrf.mxu0
  %v271 = vadd.f32 %v209, %v270
  %272 = vdwg.mxu0
  %v273 = vmax.f32 %v268, 0.0
  %v274 = vmax.f32 %v271, 0.0
  %v275 = vld [vmem:[%s5] sm:$0x1]
  %s276 = sld [smem:[#allocation2]]
  %v277 = vstv %s276
  %v279 = vsel %vm101, %v275, 0
  %281 = vmatpush.msra.mxu0 0.0
  %282 = vmatpush.msra.mxu0 0.0
  %283 = vmatpush.msra.mxu0 0.0
  %284 = vmatpush.msra.mxu0 0.0
  %285 = vmatpush.msra.mxu0 0.0
  %286 = vmatpush.msra.mxu0 0.0
  %287 = vmatpush.msra.mxu0 0.0
  %288 = vmatpush.msra.mxu0 0.0
  %289 = vmatpush.msra.mxu0 0.0
  %290 = vmatpush.msra.mxu0 0.0
  %291 = vmatpush.msra.mxu0 0.0
  %292 = vmatpush.msra.mxu0 0.0
  %293 = vmatpush.msra.mxu0 0.0
  %294 = vmatpush.msra.mxu0 0.0
  %295 = vmatpush.msra.mxu0 %v274
  %296 = vmatpush.msra.mxu0 %v273
  %297 = vmatmul.f32.gmra.mxu0 %v279
  %v298 = vpop.f32.mrf.mxu0
  %v299 = vadd.f32 %v277, %v298
  %300 = vdwg.mxu0
  %301 = vst [vmem:[%s7] sm:$0x1] %v299
  // Predicated region
  $region30: #{bike_volume_nn.1} parent=0 // pred_check
    _
  $region31: #{bike_volume_nn.1} parent=0 // pred_check_branch
    %303 = sbr.rel (0) target = $region33
  $region32: #{bike_volume_nn.1} parent=0 // pred_region
    _
  $region33: #{bike_volume_nn.1} parent=0 // pred_fallthru
    _
  // Predicated region
  $region34: #{bike_volume_nn.1} parent=0 // pred_check
    _
  $region35: #{bike_volume_nn.1} parent=0 // pred_check_branch
    %305 = sbr.rel (0) target = $region37
  $region36: #{bike_volume_nn.1} parent=0 // pred_region
    _
  $region37: #{bike_volume_nn.1} parent=0 // pred_fallthru
    _

</llo_original>
